<compile_context>
chip_gen: v5e
topology: v5e:2x2
jax: 0.10.0
libtpu: 0.0.40
codegen_flags: <defaults>
</compile_context>

<pallas_src>
import jax
import jax.numpy as jnp
from jax.experimental import pallas as pl
from jax.experimental.pallas import tpu as pltpu


def _round_up(n: int, m: int) -> int:
    return ((n + m - 1) // m) * m


def mlp_relu_kernel(x_ref, w1_ref, b1_ref, w2_ref, b2_ref, w3_ref, b3_ref, o_ref):
    # Transposed layout:
    #   x_ref : (8, TB)    w_k : (out_k, in_k)    b_k : (out_k, 1)    o_ref : (1, TB)
    x = x_ref[...]  # f32, no cast needed

    h1 = jnp.dot(w1_ref[...], x, preferred_element_type=jnp.float32) + b1_ref[...]
    h1 = jnp.maximum(h1, 0.0)                                   # (6, TB)

    h2 = jnp.dot(w2_ref[...], h1, preferred_element_type=jnp.float32) + b2_ref[...]
    h2 = jnp.maximum(h2, 0.0)                                   # (4, TB)

    h3 = jnp.dot(w3_ref[...], h2, preferred_element_type=jnp.float32) + b3_ref[...]
    h3 = jnp.maximum(h3, 0.0)                                   # (1, TB)

    o_ref[...] = h3.astype(o_ref.dtype)


def model_relu_forward(x, params, *, block_b=1024):
    """Forward pass. x: (B, 8) f32. params: (w1,b1,w2,b2,w3,b3), w_k (out,in), b_k (out,1)."""
    w1, b1, w2, b2, w3, b3 = params
    B, F = x.shape

    # Batch tile on the lane axis: multiple of 128; collapse to one tile for small B.
    tb = min(block_b, _round_up(max(B, 1), 128))
    Bp = _round_up(B, tb)
    n_tiles = Bp // tb

    # Lane-dense layout: batch goes on the last (lane) axis. Zero-padded batch
    # columns flow through relu(W*0 + b) harmlessly and are sliced off below.
    x_t = jnp.zeros((F, Bp), x.dtype).at[:, :B].set(x.T)

    out_t = pl.pallas_call(
        mlp_relu_kernel,
        out_shape=jax.ShapeDtypeStruct((1, Bp), x.dtype),
        grid=(n_tiles,),
        in_specs=[
            pl.BlockSpec((F, tb), lambda i: (0, i)),      # x tile: pipelined over batch
            pl.BlockSpec(w1.shape, lambda i: (0, 0)),     # weights / biases stay resident
            pl.BlockSpec(b1.shape, lambda i: (0, 0)),
            pl.BlockSpec(w2.shape, lambda i: (0, 0)),
            pl.BlockSpec(b2.shape, lambda i: (0, 0)),
            pl.BlockSpec(w3.shape, lambda i: (0, 0)),
            pl.BlockSpec(b3.shape, lambda i: (0, 0)),
        ],
        out_specs=pl.BlockSpec((1, tb), lambda i: (0, i)),  # lane-dense output store
        compiler_params=pltpu.CompilerParams(
            dimension_semantics=("parallel",),  # batch tiles are independent (v7x: 2 TCs)
        ),
    )(x_t, w1, b1, w2, b2, w3, b3)

    # Back to PyTorch layout (B, 1), dropping batch padding.
    return out_t.T[:B, :]


def init_params(key):
    # Mimic PyTorch nn.Linear default init: U(-1/sqrt(fan_in), 1/sqrt(fan_in)).
    def linear_init(k, fan_in, fan_out):
        kw, kb = jax.random.split(k)
        bound = 1.0 / float(fan_in) ** 0.5
        w = jax.random.uniform(kw, (fan_out, fan_in), jnp.float32, -bound, bound)  # (out, in)
        b = jax.random.uniform(kb, (fan_out, 1), jnp.float32, -bound, bound)       # (out, 1)
        return w, b

    k1, k2, k3 = jax.random.split(key, 3)
    w1, b1 = linear_init(k1, 8, 6)
    w2, b2 = linear_init(k2, 6, 4)
    w3, b3 = linear_init(k3, 4, 1)
    return (w1, b1, w2, b2, w3, b3)


def reference(x, params):
    w1, b1, w2, b2, w3, b3 = params
    h = jnp.maximum(x @ w1.T + b1.T, 0.0)
    h = jnp.maximum(h @ w2.T + b2.T, 0.0)
    h = jnp.maximum(h @ w3.T + b3.T, 0.0)
    return h


if __name__ == "__main__":
    key = jax.random.PRNGKey(0)
    k_params, k_x1, k_x2 = jax.random.split(key, 3)
    params = init_params(k_params)

    # Small "multiple dimension input": batch of 8 samples, 8 features each.
    x_small = jax.random.normal(k_x1, (8, 8), jnp.float32)
    out_small = jax.block_until_ready(model_relu_forward(x_small, params))
    assert out_small.shape == (8, 1)
    assert jnp.allclose(out_small, reference(x_small, params), atol=1e-5), "small-batch mismatch"

    # Non-multiple-of-tile batch with a multi-tile grid (exercises padding + pipelining).
    x_big = jax.random.normal(k_x2, (300, 8), jnp.float32)
    out_big = jax.block_until_ready(model_relu_forward(x_big, params, block_b=128))
    assert out_big.shape == (300, 1)
    assert jnp.allclose(out_big, reference(x_big, params), atol=1e-5), "tiled-batch mismatch"

    print("KERNEL_OK")
</pallas_src>

<mosaic_0001>
module attributes {stable_mosaic.version = 11 : i64} {
  func.func @mlp_relu_kernel(%arg0: i32, %arg1: memref<8x128xf32, #tpu.memory_space<vmem>>, %arg2: memref<6x8xf32, #tpu.memory_space<vmem>>, %arg3: memref<6x1xf32, #tpu.memory_space<vmem>>, %arg4: memref<4x6xf32, #tpu.memory_space<vmem>>, %arg5: memref<4x1xf32, #tpu.memory_space<vmem>>, %arg6: memref<1x4xf32, #tpu.memory_space<vmem>>, %arg7: memref<1x1xf32, #tpu.memory_space<vmem>>, %arg8: memref<1x128xf32, #tpu.memory_space<vmem>>) attributes {dimension_semantics = [#tpu.dimension_semantics<parallel>], iteration_bounds = array<i64: 1>, scalar_prefetch = 0 : i64, scratch_operands = 0 : i64, tpu.core_type = #tpu.core_type<tc>, window_params = [{transform_indices = @transform_0, window_bounds = array<i64: 8, 128>}, {pipeline_mode = #tpu.pipeline_mode<synchronous>, transform_indices = @transform_1, window_bounds = array<i64: 6, 8>}, {pipeline_mode = #tpu.pipeline_mode<synchronous>, transform_indices = @transform_2, window_bounds = array<i64: 6, 1>}, {pipeline_mode = #tpu.pipeline_mode<synchronous>, transform_indices = @transform_3, window_bounds = array<i64: 4, 6>}, {pipeline_mode = #tpu.pipeline_mode<synchronous>, transform_indices = @transform_4, window_bounds = array<i64: 4, 1>}, {pipeline_mode = #tpu.pipeline_mode<synchronous>, transform_indices = @transform_5, window_bounds = array<i64: 1, 4>}, {pipeline_mode = #tpu.pipeline_mode<synchronous>, transform_indices = @transform_6, window_bounds = array<i64: 1, 1>}, {transform_indices = @transform_7, window_bounds = array<i64: 1, 128>}]} {
    %c0 = arith.constant 0 : index
    %c0_0 = arith.constant 0 : index
    %0 = vector.load %arg1[%c0, %c0_0] : memref<8x128xf32, #tpu.memory_space<vmem>>, vector<8x128xf32>
    %c0_1 = arith.constant 0 : index
    %c0_2 = arith.constant 0 : index
    %1 = vector.load %arg2[%c0_1, %c0_2] : memref<6x8xf32, #tpu.memory_space<vmem>>, vector<6x8xf32>
    %cst = arith.constant dense<0.000000e+00> : vector<6x128xf32>
    %2 = tpu.matmul %1, %0, %cst {dimension_numbers = #tpu.dot_dimension_numbers<[1], [0], [0], [1], [0, 0, 1, 1], [], []>} : vector<6x8xf32>, vector<8x128xf32>, vector<6x128xf32> -> vector<6x128xf32>
    %c0_3 = arith.constant 0 : index
    %c0_4 = arith.constant 0 : index
    %3 = vector.load %arg3[%c0_3, %c0_4] : memref<6x1xf32, #tpu.memory_space<vmem>>, vector<6x1xf32>
    %4 = vector.broadcast %3 : vector<6x1xf32> to vector<6x128xf32>
    %5 = arith.addf %2, %4 : vector<6x128xf32>
    %cst_5 = arith.constant 0.000000e+00 : f32
    %6 = vector.broadcast %cst_5 : f32 to vector<6x128xf32>
    %7 = arith.maximumf %5, %6 : vector<6x128xf32>
    %c0_6 = arith.constant 0 : index
    %c0_7 = arith.constant 0 : index
    %8 = vector.load %arg4[%c0_6, %c0_7] : memref<4x6xf32, #tpu.memory_space<vmem>>, vector<4x6xf32>
    %cst_8 = arith.constant dense<0.000000e+00> : vector<4x128xf32>
    %9 = tpu.matmul %8, %7, %cst_8 {dimension_numbers = #tpu.dot_dimension_numbers<[1], [0], [0], [1], [0, 0, 1, 1], [], []>} : vector<4x6xf32>, vector<6x128xf32>, vector<4x128xf32> -> vector<4x128xf32>
    %c0_9 = arith.constant 0 : index
    %c0_10 = arith.constant 0 : index
    %10 = vector.load %arg5[%c0_9, %c0_10] : memref<4x1xf32, #tpu.memory_space<vmem>>, vector<4x1xf32>
    %11 = vector.broadcast %10 : vector<4x1xf32> to vector<4x128xf32>
    %12 = arith.addf %9, %11 : vector<4x128xf32>
    %cst_11 = arith.constant 0.000000e+00 : f32
    %13 = vector.broadcast %cst_11 : f32 to vector<4x128xf32>
    %14 = arith.maximumf %12, %13 : vector<4x128xf32>
    %c0_12 = arith.constant 0 : index
    %c0_13 = arith.constant 0 : index
    %15 = vector.load %arg6[%c0_12, %c0_13] : memref<1x4xf32, #tpu.memory_space<vmem>>, vector<1x4xf32>
    %cst_14 = arith.constant dense<0.000000e+00> : vector<1x128xf32>
    %16 = tpu.matmul %15, %14, %cst_14 {dimension_numbers = #tpu.dot_dimension_numbers<[1], [0], [0], [1], [0, 0, 1, 1], [], []>} : vector<1x4xf32>, vector<4x128xf32>, vector<1x128xf32> -> vector<1x128xf32>
    %c0_15 = arith.constant 0 : index
    %c0_16 = arith.constant 0 : index
    %17 = vector.load %arg7[%c0_15, %c0_16] : memref<1x1xf32, #tpu.memory_space<vmem>>, vector<1x1xf32>
    %18 = vector.broadcast %17 : vector<1x1xf32> to vector<1x128xf32>
    %19 = arith.addf %16, %18 : vector<1x128xf32>
    %cst_17 = arith.constant 0.000000e+00 : f32
    %20 = vector.broadcast %cst_17 : f32 to vector<1x128xf32>
    %21 = arith.maximumf %19, %20 : vector<1x128xf32>
    %c0_18 = arith.constant 0 : index
    %c0_19 = arith.constant 0 : index
    %22 = vector.load %arg8[%c0_18, %c0_19] : memref<1x128xf32, #tpu.memory_space<vmem>>, vector<1x128xf32>
    tpu.vector_store %arg8[%c0_18, %c0_19], %21 {strides = array<i32>} : memref<1x128xf32, #tpu.memory_space<vmem>>, vector<1x128xf32>,
    return
  }
  func.func @transform_0(%arg0: i32) -> (i32, i32) {
    %c0_i32 = arith.constant 0 : i32
    %c0_i32_0 = arith.constant 0 : i32
    return %c0_i32, %arg0 : i32, i32
  }
  func.func @transform_1(%arg0: i32) -> (i32, i32) {
    %c0_i32 = arith.constant 0 : i32
    %c0_i32_0 = arith.constant 0 : i32
    %c0_i32_1 = arith.constant 0 : i32
    return %c0_i32, %c0_i32_0 : i32, i32
  }
  func.func @transform_2(%arg0: i32) -> (i32, i32) {
    %c0_i32 = arith.constant 0 : i32
    %c0_i32_0 = arith.constant 0 : i32
    %c0_i32_1 = arith.constant 0 : i32
    return %c0_i32, %c0_i32_0 : i32, i32
  }
  func.func @transform_3(%arg0: i32) -> (i32, i32) {
    %c0_i32 = arith.constant 0 : i32
    %c0_i32_0 = arith.constant 0 : i32
    %c0_i32_1 = arith.constant 0 : i32
    return %c0_i32, %c0_i32_0 : i32, i32
  }
  func.func @transform_4(%arg0: i32) -> (i32, i32) {
    %c0_i32 = arith.constant 0 : i32
    %c0_i32_0 = arith.constant 0 : i32
    %c0_i32_1 = arith.constant 0 : i32
    return %c0_i32, %c0_i32_0 : i32, i32
  }
  func.func @transform_5(%arg0: i32) -> (i32, i32) {
    %c0_i32 = arith.constant 0 : i32
    %c0_i32_0 = arith.constant 0 : i32
    %c0_i32_1 = arith.constant 0 : i32
    return %c0_i32, %c0_i32_0 : i32, i32
  }
  func.func @transform_6(%arg0: i32) -> (i32, i32) {
    %c0_i32 = arith.constant 0 : i32
    %c0_i32_0 = arith.constant 0 : i32
    %c0_i32_1 = arith.constant 0 : i32
    return %c0_i32, %c0_i32_0 : i32, i32
  }
  func.func @transform_7(%arg0: i32) -> (i32, i32) {
    %c0_i32 = arith.constant 0 : i32
    %c0_i32_0 = arith.constant 0 : i32
    return %c0_i32, %arg0 : i32, i32
  }
}

</mosaic_0001>

<llo_original>
// kernel: tpu_custom_call.1
$region0: #{tpu_custom_call.1}
  #allocation0 [shape = 'u32[]', space=smem, size = 0x4, offset = 0x4, fixed_abs, tag = 'smem constant byte address 0x4 - core index']
  #allocation1 [shape = 'u32[72,128]{1,0:T(1,128)}', space=vmem, size = 0x9000, scoped, tag = 'internal scratch']
  #allocation2 [shape = 'f32[1,1]{1,0:T(1,128)S(1)}', space=vmem, size = 0x200, scoped, tag = 'scoped memory for tpu_custom_call.1']
  %s0 = inlined_call_operand.vmem [shape: f32[8,128], index: 0, kind: input, shape index: {}]
  %s1 = inlined_call_operand.hbm [shape: f32[6,8], index: 1, kind: input, shape index: {}]
  %s2 = inlined_call_operand.vmem [shape: f32[6,1], index: 2, kind: input, shape index: {}]
  %s3 = inlined_call_operand.vmem [shape: f32[4,6], index: 3, kind: input, shape index: {}]
  %s4 = inlined_call_operand.vmem [shape: f32[4,1], index: 4, kind: input, shape index: {}]
  %s5 = inlined_call_operand.vmem [shape: f32[1,4], index: 5, kind: input, shape index: {}]
  %s6 = inlined_call_operand.<no memory space> [shape: f32[1,1], index: 6, kind: input, shape index: {}]
  %s7 = inlined_call_operand.hbm [shape: f32[1,128], index: 7, kind: output, shape index: {}]
  %s8 = sld [smem:[#allocation0]]
  $region42: #{tpu_custom_call.1} parent=0
    _
  %s10 = ssub.s32 1, %s8
  %s11 = scalar_select 0, %s10, %s8
  %v12 = vstv %s6
  %13 = vst [vmem:[#allocation2] sm:$0x1] %v12
  $region1: #{tpu_custom_call.1} parent=0
    #allocation3 [shape = 'u8[4096]{0}', space=vmem, size = 0x1000, scoped, tag = 'input window, operand 1, single buffered']
    #allocation4 [shape = 's32[1]{0}', space=sflag, size = 0x4, scoped, tag = 'scoped memory for tpu_custom_call.1']
    #allocation5 [shape = 's32[1]{0}', space=sflag, size = 0x4, scoped, tag = 'scoped memory for tpu_custom_call.1']
    #allocation6 [shape = 'u8[512]{0}', space=vmem, size = 0x400, scoped, tag = 'output window, operand 0, single buffered']
    %14 = vsyncpa [#allocation4], 0
    %15 = vsyncpa [#allocation5], 0
    // Predicated region
    $region2: #{tpu_custom_call.1} parent=1 // pred_check
      _
    $region3: #{tpu_custom_call.1} parent=1 // pred_check_branch
      %17 = sbr.rel (0) target = $region5
    $region4: #{tpu_custom_call.1} parent=1 // pred_region
      _
    $region5: #{tpu_custom_call.1} parent=1 // pred_fallthru
      _
    // Predicated region
    $region6: #{tpu_custom_call.1} parent=1 // pred_check
      _
    $region7: #{tpu_custom_call.1} parent=1 // pred_check_branch
      %19 = sbr.rel (0) target = $region9
    $region8: #{tpu_custom_call.1} parent=1 // pred_region
      %21 = vsyncadd [#allocation4], 0
      %s23 = sshll.u32 %s1, 4
      %s24 = int_to_ptr.hbm [resolvable:$true] %s23
      %s25 = sshll.u32 [#allocation3], 4
      %s26 = int_to_ptr.vmem [resolvable:$true] %s25
      %28 = dma.hbm_to_vmem [thread:$0]  %s24, 128, %s26, [#allocation4]
    $region9: #{tpu_custom_call.1} parent=1 // pred_fallthru
      _
    // Predicated region
    $region10: #{tpu_custom_call.1} parent=1 // pred_check
      _
    $region11: #{tpu_custom_call.1} parent=1 // pred_check_branch
      %30 = sbr.rel (0) target = $region13
    $region12: #{tpu_custom_call.1} parent=1 // pred_region
      _
    $region13: #{tpu_custom_call.1} parent=1 // pred_fallthru
      _
    // Predicated region
    $region14: #{tpu_custom_call.1} parent=1 // pred_check
      _
    $region15: #{tpu_custom_call.1} parent=1 // pred_check_branch
      %32 = sbr.rel (0) target = $region17
    $region16: #{tpu_custom_call.1} parent=1 // pred_region
      _
    $region17: #{tpu_custom_call.1} parent=1 // pred_fallthru
      _
    // Predicated region
    $region18: #{tpu_custom_call.1} parent=1 // pred_check
      _
    $region19: #{tpu_custom_call.1} parent=1 // pred_check_branch
      %34 = sbr.rel (0) target = $region21
    $region20: #{tpu_custom_call.1} parent=1 // pred_region
      _
    $region21: #{tpu_custom_call.1} parent=1 // pred_fallthru
      _
    // Predicated region
    $region22: #{tpu_custom_call.1} parent=1 // pred_check
      _
    $region23: #{tpu_custom_call.1} parent=1 // pred_check_branch
      %36 = sbr.rel (0) target = $region25
    $region24: #{tpu_custom_call.1} parent=1 // pred_region
      _
    $region25: #{tpu_custom_call.1} parent=1 // pred_fallthru
      _
    // Predicated region
    $region26: #{tpu_custom_call.1} parent=1 // pred_check
      _
    $region27: #{tpu_custom_call.1} parent=1 // pred_check_branch
      %38 = sbr.rel (0) target = $region29
    $region28: #{tpu_custom_call.1} parent=1 // pred_region
      _
    $region29: #{tpu_custom_call.1} parent=1 // pred_fallthru
      _
    // Predicated region
    $region30: #{tpu_custom_call.1} parent=1 // pred_check
      _
    $region31: #{tpu_custom_call.1} parent=1 // pred_check_branch
      %40 = sbr.rel (0) target = $region33
    $region32: #{tpu_custom_call.1} parent=1 // pred_region
      %42 = dma.done [#allocation4], 128
    $region33: #{tpu_custom_call.1} parent=1 // pred_fallthru
      _
    %v43 = vld [vmem:[%s0] sm:$0xff]
    %v44 = vld [vmem:[#allocation3] sm:$0x3f]
    %v45 = vld [vmem:[%s2] sm:$0x3f]
    %47 = vset.pattern.permute.xlu0 0
    %48 = vperm.xlu0 %47, %v45
    %v49 = vpop.permute.xlu0 %48
    %vm51 = vcmask 64512
    %v53 = vsel %vm51, %v44, 0
    %55 = vmatpush.msra.mxu0 0.0
    %56 = vmatpush.msra.mxu0 0.0
    %57 = vmatpush.msra.mxu0 0.0
    %58 = vmatpush.msra.mxu0 0.0
    %59 = vmatpush.msra.mxu0 0.0
    %60 = vmatpush.msra.mxu0 0.0
    %61 = vmatpush.msra.mxu0 0.0
    %62 = vmatpush.msra.mxu0 0.0
    %63 = vmatpush.msra.mxu0 0.0
    %64 = vmatpush.msra.mxu0 0.0
    %65 = vmatpush.msra.mxu0 0.0
    %66 = vmatpush.msra.mxu0 0.0
    %67 = vmatpush.msra.mxu0 0.0
    %68 = vmatpush.msra.mxu0 0.0
    %69 = vmatpush.msra.mxu0 0.0
    %70 = vmatpush.msra.mxu0 %v43
    %71 = vmatmul.f32.gmra.mxu0 %v53
    %v72 = vpop.f32.mrf.mxu0
    %v73 = vadd.f32 %v49, %v72
    %74 = vdwg.mxu0
    %v75 = vmax.f32 %v73, 0.0
    %v76 = vld [vmem:[%s3] sm:$0xf]
    %v77 = vld [vmem:[%s4] sm:$0xf]
    %79 = vset.pattern.permute.xlu0 0
    %80 = vperm.xlu0 %79, %v77
    %v81 = vpop.permute.xlu0 %80
    %vm83 = vcmask 48128
    %v85 = vsel %vm83, %v76, 0
    %vm87 = vcmask 1045504
    %v89 = vsel %vm87, %v75, 0
    %91 = vmatpush.msra.mxu0 0.0
    %92 = vmatpush.msra.mxu0 0.0
    %93 = vmatpush.msra.mxu0 0.0
    %94 = vmatpush.msra.mxu0 0.0
    %95 = vmatpush.msra.mxu0 0.0
    %96 = vmatpush.msra.mxu0 0.0
    %97 = vmatpush.msra.mxu0 0.0
    %98 = vmatpush.msra.mxu0 0.0
    %99 = vmatpush.msra.mxu0 0.0
    %100 = vmatpush.msra.mxu0 0.0
    %101 = vmatpush.msra.mxu0 0.0
    %102 = vmatpush.msra.mxu0 0.0
    %103 = vmatpush.msra.mxu0 0.0
    %104 = vmatpush.msra.mxu0 0.0
    %105 = vmatpush.msra.mxu0 0.0
    %106 = vmatpush.msra.mxu0 %v89
    %107 = vmatmul.f32.gmra.mxu0 %v85
    %v108 = vpop.f32.mrf.mxu0
    %v109 = vadd.f32 %v81, %v108
    %110 = vdwg.mxu0
    %v111 = vmax.f32 %v109, 0.0
    %v112 = vld [vmem:[%s5] sm:$0x1]
    %v113 = vld [vmem:[#allocation2] sm:$0x1]
    %115 = vset.pattern.permute.xlu0 0
    %116 = vperm.xlu0 %115, %v113
    %v117 = vpop.permute.xlu0 %116
    %v119 = vperm.slane %v117, 0
    %vm120 = vcmask 31744
    %v122 = vsel %vm120, %v112, 0
    %vm124 = vcmask 1043456
    %v126 = vsel %vm124, %v111, 0
    %128 = vmatpush.msra.mxu0 0.0
    %129 = vmatpush.msra.mxu0 0.0
    %130 = vmatpush.msra.mxu0 0.0
    %131 = vmatpush.msra.mxu0 0.0
    %132 = vmatpush.msra.mxu0 0.0
    %133 = vmatpush.msra.mxu0 0.0
    %134 = vmatpush.msra.mxu0 0.0
    %135 = vmatpush.msra.mxu0 0.0
    %136 = vmatpush.msra.mxu0 0.0
    %137 = vmatpush.msra.mxu0 0.0
    %138 = vmatpush.msra.mxu0 0.0
    %139 = vmatpush.msra.mxu0 0.0
    %140 = vmatpush.msra.mxu0 0.0
    %141 = vmatpush.msra.mxu0 0.0
    %142 = vmatpush.msra.mxu0 0.0
    %143 = vmatpush.msra.mxu0 %v126
    %144 = vmatmul.f32.gmra.mxu0 %v122
    %v145 = vpop.f32.mrf.mxu0
    %v146 = vadd.f32 %v119, %v145
    %147 = vdwg.mxu0
    %v148 = vmax.f32 %v146, 0.0
    %149 = vst [vmem:[#allocation6] sm:$0x1] %v148
    // Predicated region
    $region34: #{tpu_custom_call.1} parent=1 // pred_check
      _
    $region35: #{tpu_custom_call.1} parent=1 // pred_check_branch
      %151 = sbr.rel (0) target = $region37
    $region36: #{tpu_custom_call.1} parent=1 // pred_region
      %153 = vsyncadd [#allocation5], 0
      %s155 = sshll.u32 [#allocation6], 4
      %s156 = int_to_ptr.vmem [resolvable:$true] %s155
      %s157 = sshll.u32 %s7, 4
      %s158 = int_to_ptr.hbm [resolvable:$true] %s157
      %160 = dma.vmem_to_hbm [thread:$0]  %s156, 16, %s158, [#allocation5]
    $region37: #{tpu_custom_call.1} parent=1 // pred_fallthru
      _
    // Predicated region
    $region38: #{tpu_custom_call.1} parent=1 // pred_check
      _
    $region39: #{tpu_custom_call.1} parent=1 // pred_check_branch
      %162 = sbr.rel (0) target = $region41
    $region40: #{tpu_custom_call.1} parent=1 // pred_region
      %164 = dma.done [#allocation5], 16
    $region41: #{tpu_custom_call.1} parent=1 // pred_fallthru
      _
    %165 = vsyncpa [#allocation4], 1
    %166 = vsyncpa [#allocation5], 1

</llo_original>
